<compile_context>
chip_gen: v7x
topology: tpu7x:2x2x1
jax: 0.10.0
libtpu: 0.0.40
codegen_flags: <defaults>
</compile_context>

<pallas_src>
import functools

import jax
import jax.numpy as jnp
import numpy as np
from jax.experimental import pallas as pl
from jax.experimental.pallas import tpu as pltpu

ALPHA = 0.2          # leaky_relu negative slope
NEG_BIG = -9.0e15    # mask value used by the PyTorch reference


def _round_up(x, m):
    return ((x + m - 1) // m) * m


def _pick_tile(n_pad, cap):
    """Largest multiple-of-128 tile <= cap that divides n_pad."""
    t = max(128, min(cap, n_pad))
    while n_pad % t:
        t -= 128
    return t


def _chip_generation():
    try:
        kind = jax.devices()[0].device_kind.lower().replace(" ", "")
    except Exception:
        return 0
    for g in (7, 6, 5):
        if f"v{g}" in kind or f"tpu{g}" in kind:
            return g
    return 0


# ---------------------------------------------------------------------------
# Stage 1: per-node projection and attention scalars
# ---------------------------------------------------------------------------
def proj_kernel(x_ref, wt_ref, wb_ref, a1_ref, a2s_ref, h_ref, f1_ref, f2_ref):
    # h = x @ W^T + b_W   (bf16 MXU operands, f32 accumulate).  wb[ones_col]
    # is 1.0 and wt[:, ones_col] is 0, so h[:, ones_col] == 1.0 for every row.
    h = jnp.dot(x_ref[...], wt_ref[...],
                preferred_element_type=jnp.float32) + wb_ref[...]

    # f1 = a1 . h (+ a_bias via the ones column of a1): VPU mul + lane reduce,
    # keeps the MXU free of 1-lane-wide dots.
    f1_ref[...] = jnp.sum(h * a1_ref[...], axis=1, keepdims=True)

    # f2 = a2 . h, produced directly as a lane-dense row: (8, F) x (TQ, F)^T
    # transposed-RHS MXU dot (flash-attention q@k^T shape; the MXU has slack
    # here), row 0 holds the result.  Avoids a narrow masked store in stage 1
    # and an XLA relayout copy of f2 between the two pallas calls.
    f2_rows = jax.lax.dot_general(a2s_ref[...], h, (((1,), (1,)), ((), ())),
                                  preferred_element_type=jnp.float32)  # (8, TQ)
    f2_ref[...] = f2_rows[0:1, :]

    # h is the stage-2 MXU operand: store bf16 (half the HBM traffic).
    h_ref[...] = h.astype(h_ref.dtype)


# ---------------------------------------------------------------------------
# Stage 2: masked softmax over neighbors + aggregation + ELU (flash style)
# ---------------------------------------------------------------------------
def attn_kernel(f1_ref, f2_ref, adj_ref, h_ref, o_ref, m_sc, acc_sc,
                *, ones_col, exp_in_bf16):
    k = pl.program_id(1)

    @pl.when(k == 0)
    def _():
        m_sc[...] = jnp.full_like(m_sc, -jnp.inf)
        acc_sc[...] = jnp.zeros_like(acc_sc)

    # e[i, j] = leaky_relu(f1[i] + f2[j]), then adjacency mask (ref order).
    e = f1_ref[...] + f2_ref[...]                    # (TQ,1)+(1,TK) -> (TQ,TK)
    e = jnp.maximum(e, ALPHA * e)                    # leaky_relu: mul + max
    e = jnp.where(adj_ref[...] != 0, e, NEG_BIG)     # int8 compare, no f32 cast

    # Online softmax update.  The row-sum of p (denominator l) is produced by
    # the MXU through the ones column of h, so no per-step cross-lane row-sum.
    m_prev = m_sc[...]
    m_new = jnp.maximum(m_prev, jnp.max(e, axis=1, keepdims=True))
    scale = jnp.exp(m_prev - m_new)
    d = e - m_new
    if exp_in_bf16:                    # v6e/v7x: bf16-capable EUP, ~2x exp rate
        p = jnp.exp(d.astype(jnp.bfloat16))
    else:                              # v5e: EUP has no bf16 path
        p = jnp.exp(d).astype(jnp.bfloat16)
    acc_sc[...] = scale * acc_sc[...] + jnp.dot(
        p, h_ref[...], preferred_element_type=jnp.float32)
    m_sc[...] = m_new

    @pl.when(k == pl.num_programs(1) - 1)
    def _():
        acc = acc_sc[...]
        # l = sum_j p[i, j] lives in acc's ones column.
        col = jax.lax.broadcasted_iota(jnp.int32, acc.shape, 1)
        l = jnp.sum(jnp.where(col == ones_col, acc, 0.0), axis=1, keepdims=True)
        hp = acc * (1.0 / l)           # exact reciprocal: once per row block
        # ELU (alpha = 1.0, PyTorch default)
        o_ref[...] = jnp.where(hp > 0.0, hp, jnp.exp(hp) - 1.0)


# ---------------------------------------------------------------------------
# Wrapper
# ---------------------------------------------------------------------------
def gat_forward(x, adj, w, w_bias, a, a_bias):
    """GAT layer forward (eval mode: attention dropout omitted).

    x: (N, F_in), adj: (N, N) (any dtype; nonzero == edge), w: (F_out, F_in),
    w_bias: (F_out,), a: (1, 2*F_out), a_bias: (1,).  Returns (N, F_out) f32.
    """
    N, f_in = x.shape
    f_out = w.shape[0]
    f32, bf16 = jnp.float32, jnp.bfloat16

    # ---- per-generation tuning (VMEM budget / TC count / bf16 EUP) ----------
    gen = _chip_generation()
    if gen == 7:       # 64 MiB VMEM per TC, 2 TCs/chip, bf16 EUP
        tq_cap, tk_cap, vmem_bytes, exp_in_bf16 = 1024, 512, 44 << 20, True
    elif gen == 6:     # 128 MiB VMEM, bf16 EUP
        tq_cap, tk_cap, vmem_bytes, exp_in_bf16 = 2048, 1024, 100 << 20, True
    elif gen == 5:     # 128 MiB VMEM, f32-only EUP, HBM-bandwidth sensitive
        tq_cap, tk_cap, vmem_bytes, exp_in_bf16 = 2048, 1024, 100 << 20, False
    else:              # unknown / older generation: conservative defaults
        tq_cap, tk_cap, vmem_bytes, exp_in_bf16 = 512, 512, None, False

    # ---- padded / tiled sizes ------------------------------------------------
    ones_col = f_out                     # padding column of h that holds 1.0
    f_pad = _round_up(f_out + 1, 128)    # lane-dense h / output
    n_pad = _round_up(N, 128)
    if gen == 7 and n_pad >= 256:        # keep >= 2 row blocks for both TCs
        tq_cap = min(tq_cap, max(128, (n_pad // 2) // 128 * 128))
    tq = _pick_tile(n_pad, tq_cap)       # stage-2 query-row tile
    tk = _pick_tile(n_pad, tk_cap)       # stage-2 neighbor tile
    tq1 = _pick_tile(n_pad, min(512, tq_cap))   # stage-1 row tile (small call)
    nq, nk, nq1 = n_pad // tq, n_pad // tk, n_pad // tq1

    # ---- operand preparation (layout plumbing outside the kernels) ----------
    x_bf = x.astype(bf16)
    x_p = x_bf if n_pad == N else jnp.zeros((n_pad, f_in), bf16).at[:N].set(x_bf)

    adj_i8 = adj if adj.dtype == jnp.int8 else (adj > 0).astype(jnp.int8)
    if n_pad != N:
        adj_i8 = jnp.zeros((n_pad, n_pad), jnp.int8).at[:N, :N].set(adj_i8)

    wt_p = jnp.zeros((f_in, f_pad), bf16).at[:, :f_out].set(w.T.astype(bf16))
    # bias column `ones_col` == 1.0  ->  h[:, ones_col] == 1.0 for every row:
    # the stage-2 aggregation matmul then computes the softmax denominator.
    wb_p = (jnp.zeros((1, f_pad), f32)
            .at[0, :f_out].set(w_bias.astype(f32))
            .at[0, ones_col].set(1.0))
    # a_bias rides on the ones column of a1 (no extra scalar input needed).
    a1_p = (jnp.zeros((1, f_pad), f32)
            .at[0, :f_out].set(a[0, :f_out].astype(f32))
            .at[0, ones_col].set(a_bias.astype(f32)[0]))
    # a2 as row 0 of an (8, f_pad) tile-aligned LHS for the transposed dot.
    a2s_p = jnp.zeros((8, f_pad), f32).at[0, :f_out].set(a[0, f_out:].astype(f32))

    cp_kwargs = {}
    if vmem_bytes is not None:
        cp_kwargs["vmem_limit_bytes"] = vmem_bytes

    # ---- stage 1: projection -------------------------------------------------
    h, f1, f2_row = pl.pallas_call(
        proj_kernel,
        grid=(nq1,),
        in_specs=[
            pl.BlockSpec((tq1, f_in), lambda i: (i, 0)),     # x (bf16)
            pl.BlockSpec((f_in, f_pad), lambda i: (0, 0)),   # W^T (bf16)
            pl.BlockSpec((1, f_pad), lambda i: (0, 0)),      # bias (+ ones col)
            pl.BlockSpec((1, f_pad), lambda i: (0, 0)),      # a1 (+ a_bias col)
            pl.BlockSpec((8, f_pad), lambda i: (0, 0)),      # a2 (row 0)
        ],
        out_specs=[
            pl.BlockSpec((tq1, f_pad), lambda i: (i, 0)),    # h (bf16)
            pl.BlockSpec((tq1, 1), lambda i: (i, 0)),        # f1 column
            pl.BlockSpec((1, tq1), lambda i: (0, i)),        # f2 lane-dense row
        ],
        out_shape=[
            jax.ShapeDtypeStruct((n_pad, f_pad), bf16),
            jax.ShapeDtypeStruct((n_pad, 1), f32),
            jax.ShapeDtypeStruct((1, n_pad), f32),
        ],
        compiler_params=pltpu.CompilerParams(
            dimension_semantics=("parallel",), **cp_kwargs),
    )(x_p, wt_p, wb_p, a1_p, a2s_p)

    # ---- stage 2: flash-style masked softmax + aggregation + ELU -------------
    out_p = pl.pallas_call(
        functools.partial(attn_kernel, ones_col=ones_col,
                          exp_in_bf16=exp_in_bf16),
        grid=(nq, nk),
        in_specs=[
            pl.BlockSpec((tq, 1), lambda i, k: (i, 0)),      # f1 (query side)
            pl.BlockSpec((1, tk), lambda i, k: (0, k)),      # f2 (neighbor side)
            pl.BlockSpec((tq, tk), lambda i, k: (i, k)),     # adj (int8)
            pl.BlockSpec((tk, f_pad), lambda i, k: (k, 0)),  # h (bf16, KV side)
        ],
        out_specs=pl.BlockSpec((tq, f_pad), lambda i, k: (i, 0)),
        out_shape=jax.ShapeDtypeStruct((n_pad, f_pad), f32),
        scratch_shapes=[
            pltpu.VMEM((tq, 1), f32),        # m  (running max)
            pltpu.VMEM((tq, f_pad), f32),    # acc (feature sums + l column)
        ],
        compiler_params=pltpu.CompilerParams(
            dimension_semantics=("parallel", "arbitrary"), **cp_kwargs),
    )(f1, f2_row, adj_i8, h)

    return out_p[:N, :f_out]


# ---------------------------------------------------------------------------
# Pure-JAX reference (eval mode) and test
# ---------------------------------------------------------------------------
def gat_reference(x, adj, w, w_bias, a, a_bias):
    h = x @ w.T + w_bias
    _, f_out = h.shape
    a1 = a[0, :f_out]
    a2 = a[0, f_out:]
    e = h @ a1[:, None] + (h @ a2[:, None]).T + a_bias[0]
    e = jnp.where(e > 0.0, e, ALPHA * e)
    e = jnp.where(adj > 0.0, e, NEG_BIG)
    attn = jax.nn.softmax(e, axis=1)
    hp = attn @ h
    return jnp.where(hp > 0.0, hp, jnp.exp(hp) - 1.0)


if __name__ == "__main__":
    N = 16          # number of graph nodes
    F_IN = 8        # in_features
    F_OUT = 32      # out_features

    key = jax.random.PRNGKey(0)
    k_x, k_adj, k_w, k_wb, k_a, k_ab = jax.random.split(key, 6)

    x = jax.random.normal(k_x, (N, F_IN), dtype=jnp.float32)
    adj = (jax.random.uniform(k_adj, (N, N)) > 0.5).astype(jnp.float32)
    # make sure diagonal is connected (typical GAT usage)
    adj = jnp.maximum(adj, jnp.eye(N, dtype=jnp.float32))

    # deterministic parameter init (shapes from nn.Linear in __init__)
    w = jax.random.normal(k_w, (F_OUT, F_IN), dtype=jnp.float32) * 0.1
    w_bias = jax.random.normal(k_wb, (F_OUT,), dtype=jnp.float32) * 0.1
    a = jax.random.normal(k_a, (1, 2 * F_OUT), dtype=jnp.float32) * 0.1
    a_bias = jax.random.normal(k_ab, (1,), dtype=jnp.float32) * 0.1

    out = jax.block_until_ready(gat_forward(x, adj, w, w_bias, a, a_bias))
    ref = jax.block_until_ready(gat_reference(x, adj, w, w_bias, a, a_bias))
    np.testing.assert_allclose(np.asarray(out), np.asarray(ref),
                               rtol=2e-2, atol=2e-2)

    print("KERNEL_OK")
</pallas_src>

<mosaic_0001>
module attributes {stable_mosaic.version = 11 : i64} {
  func.func @proj_kernel(%arg0: i32, %arg1: memref<128x8xbf16, #tpu.memory_space<vmem>>, %arg2: memref<8x128xbf16, #tpu.memory_space<vmem>>, %arg3: memref<1x128xf32, #tpu.memory_space<vmem>>, %arg4: memref<1x128xf32, #tpu.memory_space<vmem>>, %arg5: memref<8x128xf32, #tpu.memory_space<vmem>>, %arg6: memref<128x128xbf16, #tpu.memory_space<vmem>>, %arg7: memref<128x1xf32, #tpu.memory_space<vmem>>, %arg8: memref<1x128xf32, #tpu.memory_space<vmem>>) attributes {dimension_semantics = [#tpu.dimension_semantics<parallel>], iteration_bounds = array<i64: 1>, scalar_prefetch = 0 : i64, scratch_operands = 0 : i64, tpu.core_type = #tpu.core_type<tc>, window_params = [{transform_indices = @transform_0, window_bounds = array<i64: 128, 8>}, {pipeline_mode = #tpu.pipeline_mode<synchronous>, transform_indices = @transform_1, window_bounds = array<i64: 8, 128>}, {pipeline_mode = #tpu.pipeline_mode<synchronous>, transform_indices = @transform_2, window_bounds = array<i64: 1, 128>}, {pipeline_mode = #tpu.pipeline_mode<synchronous>, transform_indices = @transform_3, window_bounds = array<i64: 1, 128>}, {pipeline_mode = #tpu.pipeline_mode<synchronous>, transform_indices = @transform_4, window_bounds = array<i64: 8, 128>}, {transform_indices = @transform_5, window_bounds = array<i64: 128, 128>}, {transform_indices = @transform_6, window_bounds = array<i64: 128, 1>}, {transform_indices = @transform_7, window_bounds = array<i64: 1, 128>}]} {
    %c0 = arith.constant 0 : index
    %c0_0 = arith.constant 0 : index
    %0 = vector.load %arg1[%c0, %c0_0] : memref<128x8xbf16, #tpu.memory_space<vmem>>, vector<128x8xbf16>
    %c0_1 = arith.constant 0 : index
    %c0_2 = arith.constant 0 : index
    %1 = vector.load %arg2[%c0_1, %c0_2] : memref<8x128xbf16, #tpu.memory_space<vmem>>, vector<8x128xbf16>
    %cst = arith.constant dense<0.000000e+00> : vector<128x128xf32>
    %2 = tpu.matmul %0, %1, %cst {dimension_numbers = #tpu.dot_dimension_numbers<[1], [0], [0], [1], [0, 0, 1, 1], [], []>} : vector<128x8xbf16>, vector<8x128xbf16>, vector<128x128xf32> -> vector<128x128xf32>
    %c0_3 = arith.constant 0 : index
    %c0_4 = arith.constant 0 : index
    %3 = vector.load %arg3[%c0_3, %c0_4] : memref<1x128xf32, #tpu.memory_space<vmem>>, vector<1x128xf32>
    %4 = vector.broadcast %3 : vector<1x128xf32> to vector<128x128xf32>
    %5 = arith.addf %2, %4 : vector<128x128xf32>
    %c0_5 = arith.constant 0 : index
    %c0_6 = arith.constant 0 : index
    %6 = vector.load %arg4[%c0_5, %c0_6] : memref<1x128xf32, #tpu.memory_space<vmem>>, vector<1x128xf32>
    %7 = vector.broadcast %6 : vector<1x128xf32> to vector<128x128xf32>
    %8 = arith.mulf %5, %7 : vector<128x128xf32>
    %cst_7 = arith.constant dense<0.000000e+00> : vector<128xf32>
    %9 = vector.multi_reduction <add>, %8, %cst_7 [1] : vector<128x128xf32> to vector<128xf32>
    %10 = vector.shape_cast %9 : vector<128xf32> to vector<128x1xf32>
    %c0_8 = arith.constant 0 : index
    %c0_9 = arith.constant 0 : index
    %11 = vector.load %arg7[%c0_8, %c0_9] : memref<128x1xf32, #tpu.memory_space<vmem>>, vector<128x1xf32>
    tpu.vector_store %arg7[%c0_8, %c0_9], %10 {strides = array<i32>} : memref<128x1xf32, #tpu.memory_space<vmem>>, vector<128x1xf32>,
    %c0_10 = arith.constant 0 : index
    %c0_11 = arith.constant 0 : index
    %12 = vector.load %arg5[%c0_10, %c0_11] : memref<8x128xf32, #tpu.memory_space<vmem>>, vector<8x128xf32>
    %cst_12 = arith.constant dense<0.000000e+00> : vector<8x128xf32>
    %13 = tpu.matmul %12, %5, %cst_12 {dimension_numbers = #tpu.dot_dimension_numbers<[1], [1], [0], [0], [0, 0, 1, 0], [], []>} : vector<8x128xf32>, vector<128x128xf32>, vector<8x128xf32> -> vector<8x128xf32>
    %14 = vector.extract_strided_slice %13 {offsets = [0, 0], sizes = [1, 128], strides = [1, 1]} : vector<8x128xf32> to vector<1x128xf32>
    %c0_13 = arith.constant 0 : index
    %c0_14 = arith.constant 0 : index
    %15 = vector.load %arg8[%c0_13, %c0_14] : memref<1x128xf32, #tpu.memory_space<vmem>>, vector<1x128xf32>
    tpu.vector_store %arg8[%c0_13, %c0_14], %14 {strides = array<i32>} : memref<1x128xf32, #tpu.memory_space<vmem>>, vector<1x128xf32>,
    %16 = arith.truncf %5 : vector<128x128xf32> to vector<128x128xbf16>
    %c0_15 = arith.constant 0 : index
    %c0_16 = arith.constant 0 : index
    %17 = vector.load %arg6[%c0_15, %c0_16] : memref<128x128xbf16, #tpu.memory_space<vmem>>, vector<128x128xbf16>
    tpu.vector_store %arg6[%c0_15, %c0_16], %16 {strides = array<i32>} : memref<128x128xbf16, #tpu.memory_space<vmem>>, vector<128x128xbf16>,
    return
  }
  func.func @transform_0(%arg0: i32) -> (i32, i32) {
    %c0_i32 = arith.constant 0 : i32
    %c0_i32_0 = arith.constant 0 : i32
    return %arg0, %c0_i32 : i32, i32
  }
  func.func @transform_1(%arg0: i32) -> (i32, i32) {
    %c0_i32 = arith.constant 0 : i32
    %c0_i32_0 = arith.constant 0 : i32
    %c0_i32_1 = arith.constant 0 : i32
    return %c0_i32, %c0_i32_0 : i32, i32
  }
  func.func @transform_2(%arg0: i32) -> (i32, i32) {
    %c0_i32 = arith.constant 0 : i32
    %c0_i32_0 = arith.constant 0 : i32
    %c0_i32_1 = arith.constant 0 : i32
    return %c0_i32, %c0_i32_0 : i32, i32
  }
  func.func @transform_3(%arg0: i32) -> (i32, i32) {
    %c0_i32 = arith.constant 0 : i32
    %c0_i32_0 = arith.constant 0 : i32
    %c0_i32_1 = arith.constant 0 : i32
    return %c0_i32, %c0_i32_0 : i32, i32
  }
  func.func @transform_4(%arg0: i32) -> (i32, i32) {
    %c0_i32 = arith.constant 0 : i32
    %c0_i32_0 = arith.constant 0 : i32
    %c0_i32_1 = arith.constant 0 : i32
    return %c0_i32, %c0_i32_0 : i32, i32
  }
  func.func @transform_5(%arg0: i32) -> (i32, i32) {
    %c0_i32 = arith.constant 0 : i32
    %c0_i32_0 = arith.constant 0 : i32
    return %arg0, %c0_i32 : i32, i32
  }
  func.func @transform_6(%arg0: i32) -> (i32, i32) {
    %c0_i32 = arith.constant 0 : i32
    %c0_i32_0 = arith.constant 0 : i32
    return %arg0, %c0_i32 : i32, i32
  }
  func.func @transform_7(%arg0: i32) -> (i32, i32) {
    %c0_i32 = arith.constant 0 : i32
    %c0_i32_0 = arith.constant 0 : i32
    return %c0_i32, %arg0 : i32, i32
  }
}

</mosaic_0001>

<llo_original>
// kernel: tpu_custom_call.1
$region0: #{tpu_custom_call.1}
  #allocation0 [shape = 'u32[]', space=smem, size = 0x4, offset = 0x4, fixed_abs, tag = 'smem constant byte address 0x4 - core index']
  #allocation1 [shape = 'u32[144,128]{1,0:T(1,128)}', space=vmem, size = 0x12000, scoped, tag = 'internal scratch']
  %s0 = inlined_call_operand.vmem [shape: bf16[128,8], index: 0, kind: input, shape index: {}]
  %s1 = inlined_call_operand.vmem [shape: bf16[8,128], index: 1, kind: input, shape index: {}]
  %s2 = inlined_call_operand.vmem [shape: f32[1,128], index: 2, kind: input, shape index: {}]
  %s3 = inlined_call_operand.vmem [shape: f32[1,128], index: 3, kind: input, shape index: {}]
  %s4 = inlined_call_operand.vmem [shape: f32[8,128], index: 4, kind: input, shape index: {}]
  %s5 = inlined_call_operand.hbm [shape: bf16[128,128], index: 5, kind: output, shape index: {0}]
  %s6 = inlined_call_operand.vmem [shape: f32[128,1], index: 6, kind: output, shape index: {1}]
  %s7 = inlined_call_operand.hbm [shape: f32[1,128], index: 7, kind: output, shape index: {2}]
  %8 = xla_tuple %s5, %s6, %s7
  %s9 = sld [smem:[#allocation0]]
  $region46: #{tpu_custom_call.1} parent=0
    _
  %s11 = ssub.s32 1, %s9
  %s12 = scalar_select 0, %s11, %s9
  $region1: #{tpu_custom_call.1} parent=0
    #allocation2 [shape = 'u8[32768]{0}', space=vmem, size = 0x8000, scoped, tag = 'output window, operand 0, single buffered']
    #allocation3 [shape = 's32[1]{0}', space=sflag, size = 0x4, scoped, tag = 'scoped memory for tpu_custom_call.1']
    #allocation4 [shape = 'u8[512]{0}', space=vmem, size = 0x400, scoped, tag = 'output window, operand 2, single buffered']
    #allocation5 [shape = 's32[1]{0}', space=sflag, size = 0x4, scoped, tag = 'scoped memory for tpu_custom_call.1']
    %13 = vsyncpa [#allocation3], 0
    %14 = vsyncpa [#allocation5], 0
    // Predicated region
    $region2: #{tpu_custom_call.1} parent=1 // pred_check
      _
    $region3: #{tpu_custom_call.1} parent=1 // pred_check_branch
      %16 = sbr.rel (0) target = $region5
    $region4: #{tpu_custom_call.1} parent=1 // pred_region
      _
    $region5: #{tpu_custom_call.1} parent=1 // pred_fallthru
      _
    // Predicated region
    $region6: #{tpu_custom_call.1} parent=1 // pred_check
      _
    $region7: #{tpu_custom_call.1} parent=1 // pred_check_branch
      %18 = sbr.rel (0) target = $region9
    $region8: #{tpu_custom_call.1} parent=1 // pred_region
      _
    $region9: #{tpu_custom_call.1} parent=1 // pred_fallthru
      _
    // Predicated region
    $region10: #{tpu_custom_call.1} parent=1 // pred_check
      _
    $region11: #{tpu_custom_call.1} parent=1 // pred_check_branch
      %20 = sbr.rel (0) target = $region13
    $region12: #{tpu_custom_call.1} parent=1 // pred_region
      _
    $region13: #{tpu_custom_call.1} parent=1 // pred_fallthru
      _
    // Predicated region
    $region14: #{tpu_custom_call.1} parent=1 // pred_check
      _
    $region15: #{tpu_custom_call.1} parent=1 // pred_check_branch
      %22 = sbr.rel (0) target = $region17
    $region16: #{tpu_custom_call.1} parent=1 // pred_region
      _
    $region17: #{tpu_custom_call.1} parent=1 // pred_fallthru
      _
    // Predicated region
    $region18: #{tpu_custom_call.1} parent=1 // pred_check
      _
    $region19: #{tpu_custom_call.1} parent=1 // pred_check_branch
      %24 = sbr.rel (0) target = $region21
    $region20: #{tpu_custom_call.1} parent=1 // pred_region
      _
    $region21: #{tpu_custom_call.1} parent=1 // pred_fallthru
      _
    %v26 = vld [vmem:[%s0] sm:$0xf]
    %v27 = vld [vmem:[%s0 + $0x4] sm:$0xf]
    %v28 = vld [vmem:[%s0 + $0x8] sm:$0xf]
    %v29 = vld [vmem:[%s0 + $0xc] sm:$0xf]
    %v30 = vld [vmem:[%s0 + $0x10] sm:$0xf]
    %v31 = vld [vmem:[%s0 + $0x14] sm:$0xf]
    %v32 = vld [vmem:[%s0 + $0x18] sm:$0xf]
    %v33 = vld [vmem:[%s0 + $0x1c] sm:$0xf]
    %v34 = vld [vmem:[%s0 + $0x20] sm:$0xf]
    %v35 = vld [vmem:[%s0 + $0x24] sm:$0xf]
    %v36 = vld [vmem:[%s0 + $0x28] sm:$0xf]
    %v37 = vld [vmem:[%s0 + $0x2c] sm:$0xf]
    %v38 = vld [vmem:[%s0 + $0x30] sm:$0xf]
    %v39 = vld [vmem:[%s0 + $0x34] sm:$0xf]
    %v40 = vld [vmem:[%s0 + $0x38] sm:$0xf]
    %v41 = vld [vmem:[%s0 + $0x3c] sm:$0xf]
    %v42 = vld [vmem:[%s1] sm:$0xf]
    %v43 = vld [vmem:[%s2] sm:$0x1]
    %v45 = vlaneseq
    %v46 = vshrl.u32 %v45, 7
    %v47 = vsub.s32 0, %v46
    %v48 = vrot.slane %v43, %v47
    %v66 = vunpack.c.l.b16 %v26
    %v67 = vunpack.c.l.b16 %v27
    %v68 = vunpack.c.l.b16 %v28
    %v69 = vunpack.c.l.b16 %v29
    %v70 = vunpack.c.l.b16 %v30
    %v71 = vunpack.c.l.b16 %v31
    %v72 = vunpack.c.l.b16 %v32
    %v73 = vunpack.c.l.b16 %v33
    %v74 = vunpack.c.l.b16 %v34
    %v75 = vunpack.c.l.b16 %v35
    %v76 = vunpack.c.l.b16 %v36
    %v77 = vunpack.c.l.b16 %v37
    %v78 = vunpack.c.l.b16 %v38
    %v79 = vunpack.c.l.b16 %v39
    %v80 = vunpack.c.l.b16 %v40
    %v81 = vunpack.c.l.b16 %v41
    %v82 = vpack.c.b16 %v67, %v66
    %v83 = vpack.c.b16 %v69, %v68
    %v84 = vpack.c.b16 %v71, %v70
    %v85 = vpack.c.b16 %v73, %v72
    %v86 = vpack.c.b16 %v75, %v74
    %v87 = vpack.c.b16 %v77, %v76
    %v88 = vpack.c.b16 %v79, %v78
    %v89 = vpack.c.b16 %v81, %v80
    %vm90 = vcmask 64512
    %v92 = vsel %vm90, %v82, 0
    %v95 = vsel %vm90, %v83, 0
    %v98 = vsel %vm90, %v84, 0
    %v101 = vsel %vm90, %v85, 0
    %v104 = vsel %vm90, %v86, 0
    %v107 = vsel %vm90, %v87, 0
    %v110 = vsel %vm90, %v88, 0
    %v113 = vsel %vm90, %v89, 0
    %vm115 = vcmask 1043456
    %v117 = vsel %vm115, %v42, 0
    %119 = vmatprep.subr.bf16.mxu0 0
    %120 = vmatpush1.bf16.msra.mxu0 %v117
    %121 = vmatprep.subr.bf16.mxu0 0
    %122 = vmatpush1.bf16.msra.mxu0 0
    %123 = vmatprep.subr.bf16.mxu0 0
    %124 = vmatpush1.bf16.msra.mxu0 0
    %125 = vmatprep.subr.bf16.mxu0 0
    %126 = vmatpush1.bf16.msra.mxu0 0
    %127 = vmatprep.subr.bf16.mxu0 0
    %128 = vmatpush1.bf16.msra.mxu0 0
    %129 = vmatprep.subr.bf16.mxu0 0
    %130 = vmatpush1.bf16.msra.mxu0 0
    %131 = vmatprep.subr.bf16.mxu0 0
    %132 = vmatpush1.bf16.msra.mxu0 0
    %133 = vmatprep.subr.bf16.mxu0 0
    %134 = vmatpush1.bf16.msra.mxu0 0
    %135 = vmatprep.subr.bf16.mxu0 0
    %136 = vmatpush1.bf16.msra.mxu0 0
    %137 = vmatprep.subr.bf16.mxu0 0
    %138 = vmatpush1.bf16.msra.mxu0 0
    %139 = vmatprep.subr.bf16.mxu0 0
    %140 = vmatpush1.bf16.msra.mxu0 0
    %141 = vmatprep.subr.bf16.mxu0 0
    %142 = vmatpush1.bf16.msra.mxu0 0
    %143 = vmatprep.subr.bf16.mxu0 0
    %144 = vmatpush1.bf16.msra.mxu0 0
    %145 = vmatprep.subr.bf16.mxu0 0
    %146 = vmatpush1.bf16.msra.mxu0 0
    %147 = vmatprep.subr.bf16.mxu0 0
    %148 = vmatpush1.bf16.msra.mxu0 0
    %149 = vmatprep.subr.bf16.mxu0 0
    %150 = vmatpush1.bf16.msra.mxu0 0
    %151 = vmatprep.mubr.bf16.mxu0 0
    %152 = vmatmul.mubr.bf16.gmra.mrb[0].mxu0 %v92
    %v153 = vpop.f32.mrb[0].mxu0
    %v154 = vadd.f32 %v48, %v153
    %v155 = vpop.f32.mrb[0].mxu0
    %v156 = vpop.f32.mrb[0].mxu0
    %v157 = vadd.f32 %v48, %v156
    %v158 = vpop.f32.mrb[0].mxu0
    %159 = vmatprep.mubr.bf16.mxu0 0
    %160 = vmatmul.mubr.bf16.gmra.mrb[0].mxu0 %v95
    %v161 = vpop.f32.mrb[0].mxu0
    %v162 = vadd.f32 %v48, %v161
    %v163 = vpop.f32.mrb[0].mxu0
    %v164 = vpop.f32.mrb[0].mxu0
    %v165 = vadd.f32 %v48, %v164
    %v166 = vpop.f32.mrb[0].mxu0
    %167 = vmatprep.mubr.bf16.mxu0 0
    %168 = vmatmul.mubr.bf16.gmra.mrb[0].mxu0 %v98
    %v169 = vpop.f32.mrb[0].mxu0
    %v170 = vadd.f32 %v48, %v169
    %v171 = vpop.f32.mrb[0].mxu0
    %v172 = vpop.f32.mrb[0].mxu0
    %v173 = vadd.f32 %v48, %v172
    %v174 = vpop.f32.mrb[0].mxu0
    %175 = vmatprep.mubr.bf16.mxu0 0
    %176 = vmatmul.mubr.bf16.gmra.mrb[0].mxu0 %v101
    %v177 = vpop.f32.mrb[0].mxu0
    %v178 = vadd.f32 %v48, %v177
    %v179 = vpop.f32.mrb[0].mxu0
    %v180 = vpop.f32.mrb[0].mxu0
    %v181 = vadd.f32 %v48, %v180
    %v182 = vpop.f32.mrb[0].mxu0
    %183 = vmatprep.mubr.bf16.mxu0 0
    %184 = vmatmul.mubr.bf16.gmra.mrb[0].mxu0 %v104
    %v185 = vpop.f32.mrb[0].mxu0
    %v186 = vadd.f32 %v48, %v185
    %v187 = vpop.f32.mrb[0].mxu0
    %v188 = vpop.f32.mrb[0].mxu0
    %v189 = vadd.f32 %v48, %v188
    %v190 = vpop.f32.mrb[0].mxu0
    %191 = vmatprep.mubr.bf16.mxu0 0
    %192 = vmatmul.mubr.bf16.gmra.mrb[0].mxu0 %v107
    %v193 = vpop.f32.mrb[0].mxu0
    %v194 = vadd.f32 %v48, %v193
    %v195 = vpop.f32.mrb[0].mxu0
    %v196 = vpop.f32.mrb[0].mxu0
    %v197 = vadd.f32 %v48, %v196
    %v198 = vpop.f32.mrb[0].mxu0
    %199 = vmatprep.mubr.bf16.mxu0 0
    %200 = vmatmul.mubr.bf16.gmra.mrb[0].mxu0 %v110
    %v201 = vpop.f32.mrb[0].mxu0
    %v202 = vadd.f32 %v48, %v201
    %v203 = vpop.f32.mrb[0].mxu0
    %v204 = vpop.f32.mrb[0].mxu0
    %v205 = vadd.f32 %v48, %v204
    %v206 = vpop.f32.mrb[0].mxu0
    %207 = vmatprep.mubr.bf16.mxu0 0
    %208 = vmatmul.mubr.bf16.gmra.mrb[0].mxu0 %v113
    %v209 = vpop.f32.mrb[0].mxu0
    %v210 = vadd.f32 %v48, %v209
    %v211 = vpop.f32.mrb[0].mxu0
    %v212 = vpop.f32.mrb[0].mxu0
    %v213 = vadd.f32 %v48, %v212
    %v214 = vpop.f32.mrb[0].mxu0
    %215 = vdwg.mxu0
    %v216 = vld [vmem:[%s3] sm:$0x1]
    %v218 = vlaneseq
    %v219 = vshrl.u32 %v218, 7
    %v220 = vsub.s32 0, %v219
    %v221 = vrot.slane %v216, %v220
    %v223 = vmul.f32 %v154, %v221
    %v224 = vmul.f32 %v157, %v221
    %v225 = vmul.f32 %v162, %v221
    %v226 = vmul.f32 %v165, %v221
    %v227 = vmul.f32 %v170, %v221
    %v228 = vmul.f32 %v173, %v221
    %v229 = vmul.f32 %v178, %v221
    %v230 = vmul.f32 %v181, %v221
    %v231 = vmul.f32 %v186, %v221
    %v232 = vmul.f32 %v189, %v221
    %v233 = vmul.f32 %v194, %v221
    %v234 = vmul.f32 %v197, %v221
    %v235 = vmul.f32 %v202, %v221
    %v236 = vmul.f32 %v205, %v221
    %v237 = vmul.f32 %v210, %v221
    %v238 = vmul.f32 %v213, %v221
    %239 = vadd.xlane.f32.xlu0 %v223
    %v240 = vpop.xlane.xlu0 %239
    %241 = vadd.xlane.f32.xlu0 %v224
    %v242 = vpop.xlane.xlu0 %241
    %243 = vadd.xlane.f32.xlu0 %v225
    %v244 = vpop.xlane.xlu0 %243
    %245 = vadd.xlane.f32.xlu0 %v226
    %v246 = vpop.xlane.xlu0 %245
    %247 = vadd.xlane.f32.xlu0 %v227
    %v248 = vpop.xlane.xlu0 %247
    %249 = vadd.xlane.f32.xlu0 %v228
    %v250 = vpop.xlane.xlu0 %249
    %251 = vadd.xlane.f32.xlu0 %v229
    %v252 = vpop.xlane.xlu0 %251
    %253 = vadd.xlane.f32.xlu0 %v230
    %v254 = vpop.xlane.xlu0 %253
    %255 = vadd.xlane.f32.xlu0 %v231
    %v256 = vpop.xlane.xlu0 %255
    %257 = vadd.xlane.f32.xlu0 %v232
    %v258 = vpop.xlane.xlu0 %257
    %259 = vadd.xlane.f32.xlu0 %v233
    %v260 = vpop.xlane.xlu0 %259
    %261 = vadd.xlane.f32.xlu0 %v234
    %v262 = vpop.xlane.xlu0 %261
    %263 = vadd.xlane.f32.xlu0 %v235
    %v264 = vpop.xlane.xlu0 %263
    %265 = vadd.xlane.f32.xlu0 %v236
    %v266 = vpop.xlane.xlu0 %265
    %267 = vadd.xlane.f32.xlu0 %v237
    %v268 = vpop.xlane.xlu0 %267
    %269 = vadd.xlane.f32.xlu0 %v238
    %v270 = vpop.xlane.xlu0 %269
    %vm271 = vcmask 7168
    %272 = vst.msk [vmem:[%s6] sm:$0xff] %vm271, %v240
    %273 = vst.msk [vmem:[%s6 + $0x8] sm:$0xff] %vm271, %v242
    %274 = vst.msk [vmem:[%s6 + $0x10] sm:$0xff] %vm271, %v244
    %275 = vst.msk [vmem:[%s6 + $0x18] sm:$0xff] %vm271, %v246
    %276 = vst.msk [vmem:[%s6 + $0x20] sm:$0xff] %vm271, %v248
    %277 = vst.msk [vmem:[%s6 + $0x28] sm:$0xff] %vm271, %v250
    %278 = vst.msk [vmem:[%s6 + $0x30] sm:$0xff] %vm271, %v252
    %279 = vst.msk [vmem:[%s6 + $0x38] sm:$0xff] %vm271, %v254
    %280 = vst.msk [vmem:[%s6 + $0x40] sm:$0xff] %vm271, %v256
    %281 = vst.msk [vmem:[%s6 + $0x48] sm:$0xff] %vm271, %v258
    %282 = vst.msk [vmem:[%s6 + $0x50] sm:$0xff] %vm271, %v260
    %283 = vst.msk [vmem:[%s6 + $0x58] sm:$0xff] %vm271, %v262
    %284 = vst.msk [vmem:[%s6 + $0x60] sm:$0xff] %vm271, %v264
    %285 = vst.msk [vmem:[%s6 + $0x68] sm:$0xff] %vm271, %v266
    %286 = vst.msk [vmem:[%s6 + $0x70] sm:$0xff] %vm271, %v268
    %287 = vst.msk [vmem:[%s6 + $0x78] sm:$0xff] %vm271, %v270
    %v288 = vld [vmem:[%s4] sm:$0xff]
    %289 = vmatprep.subr.mxu0 0.0
    %290 = vmatpush1.xpose.msra.mxu0 %v154
    %291 = vmatprep.subr.mxu0 0.0
    %292 = vmatpush1.xpose.msra.mxu0 %v157
    %293 = vmatprep.subr.mxu0 0.0
    %294 = vmatpush1.xpose.msra.mxu0 %v162
    %295 = vmatprep.subr.mxu0 0.0
    %296 = vmatpush1.xpose.msra.mxu0 %v165
    %297 = vmatprep.subr.mxu0 0.0
    %298 = vmatpush1.xpose.msra.mxu0 %v170
    %299 = vmatprep.subr.mxu0 0.0
    %300 = vmatpush1.xpose.msra.mxu0 %v173
    %301 = vmatprep.subr.mxu0 0.0
    %302 = vmatpush1.xpose.msra.mxu0 %v178
    %303 = vmatprep.subr.mxu0 0.0
    %304 = vmatpush1.xpose.msra.mxu0 %v181
    %305 = vmatprep.subr.mxu0 0.0
    %306 = vmatpush1.xpose.msra.mxu0 %v186
    %307 = vmatprep.subr.mxu0 0.0
    %308 = vmatpush1.xpose.msra.mxu0 %v189
    %309 = vmatprep.subr.mxu0 0.0
    %310 = vmatpush1.xpose.msra.mxu0 %v194
    %311 = vmatprep.subr.mxu0 0.0
    %312 = vmatpush1.xpose.msra.mxu0 %v197
    %313 = vmatprep.subr.mxu0 0.0
    %314 = vmatpush1.xpose.msra.mxu0 %v202
    %315 = vmatprep.subr.mxu0 0.0
    %316 = vmatpush1.xpose.msra.mxu0 %v205
    %317 = vmatprep.subr.mxu0 0.0
    %318 = vmatpush1.xpose.msra.mxu0 %v210
    %319 = vmatprep.subr.mxu0 0.0
    %320 = vmatpush1.xpose.msra.mxu0 %v213
    %321 = vmatprep.subr.mxu0 0.0
    %322 = vmatpush1.xpose.msra.mxu0 0.0
    %323 = vmatprep.subr.mxu0 0.0
    %324 = vmatpush1.xpose.msra.mxu0 0.0
    %325 = vmatprep.subr.mxu0 0.0
    %326 = vmatpush1.xpose.msra.mxu0 0.0
    %327 = vmatprep.subr.mxu0 0.0
    %328 = vmatpush1.xpose.msra.mxu0 0.0
    %329 = vmatprep.subr.mxu0 0.0
    %330 = vmatpush1.xpose.msra.mxu0 0.0
    %331 = vmatprep.subr.mxu0 0.0
    %332 = vmatpush1.xpose.msra.mxu0 0.0
    %333 = vmatprep.subr.mxu0 0.0
    %334 = vmatpush1.xpose.msra.mxu0 0.0
    %335 = vmatprep.subr.mxu0 0.0
    %336 = vmatpush1.xpose.msra.mxu0 0.0
    %337 = vmatprep.subr.mxu0 0.0
    %338 = vmatpush1.xpose.msra.mxu0 0.0
    %339 = vmatprep.subr.mxu0 0.0
    %340 = vmatpush1.xpose.msra.mxu0 0.0
    %341 = vmatprep.subr.mxu0 0.0
    %342 = vmatpush1.xpose.msra.mxu0 0.0
    %343 = vmatprep.subr.mxu0 0.0
    %344 = vmatpush1.xpose.msra.mxu0 0.0
    %345 = vmatprep.subr.mxu0 0.0
    %346 = vmatpush1.xpose.msra.mxu0 0.0
    %347 = vmatprep.subr.mxu0 0.0
    %348 = vmatpush1.xpose.msra.mxu0 0.0
    %349 = vmatprep.subr.mxu0 0.0
    %350 = vmatpush1.xpose.msra.mxu0 0.0
    %351 = vmatprep.subr.mxu0 0.0
    %352 = vmatpush1.xpose.msra.mxu0 0.0
    %353 = vmatprep.mubr.f32.mxu0 0.0
    %354 = vmatmul.mubr.f32.gmra.mrb[0].mxu0 %v288
    %v355 = vpop.f32.mrb[0].mxu0
    %v356 = vadd.f32 0.0, %v355
    %v357 = vpop.f32.mrb[0].mxu0
    %358 = vdwg.mxu0
    %359 = vst [vmem:[#allocation4] sm:$0x1] %v356
    %v360 = vpack.c.bf16 %v157, %v154
    %v361 = vpack.c.bf16 %v165, %v162
    %v362 = vpack.c.bf16 %v173, %v170
    %v363 = vpack.c.bf16 %v181, %v178
    %v364 = vpack.c.bf16 %v189, %v186
    %v365 = vpack.c.bf16 %v197, %v194
    %v366 = vpack.c.bf16 %v205, %v202
    %v367 = vpack.c.bf16 %v213, %v210
    %v376 = vunpack.c.l.b16 %v360
    %v377 = vunpack.c.h.b16 %v360
    %v378 = vunpack.c.l.b16 %v361
    %v379 = vunpack.c.h.b16 %v361
    %v380 = vunpack.c.l.b16 %v362
    %v381 = vunpack.c.h.b16 %v362
    %v382 = vunpack.c.l.b16 %v363
    %v383 = vunpack.c.h.b16 %v363
    %v384 = vunpack.c.l.b16 %v364
    %v385 = vunpack.c.h.b16 %v364
    %v386 = vunpack.c.l.b16 %v365
    %v387 = vunpack.c.h.b16 %v365
    %v388 = vunpack.c.l.b16 %v366
    %v389 = vunpack.c.h.b16 %v366
    %v390 = vunpack.c.l.b16 %v367
    %v391 = vunpack.c.h.b16 %v367
    %v392 = vpack.c.b16 %v376, %v376
    %v393 = vpack.c.b16 %v377, %v377
    %v394 = vpack.c.b16 %v378, %v378
    %v395 = vpack.c.b16 %v379, %v379
    %v396 = vpack.c.b16 %v380, %v380
    %v397 = vpack.c.b16 %v381, %v381
    %v398 = vpack.c.b16 %v382, %v382
    %v399 = vpack.c.b16 %v383, %v383
    %v400 = vpack.c.b16 %v384, %v384
    %v401 = vpack.c.b16 %v385, %v385
    %v402 = vpack.c.b16 %v386, %v386
    %v403 = vpack.c.b16 %v387, %v387
    %v404 = vpack.c.b16 %v388, %v388
    %v405 = vpack.c.b16 %v389, %v389
    %v406 = vpack.c.b16 %v390, %v390
    %v407 = vpack.c.b16 %v391, %v391
    %424 = vst [vmem:[#allocation2] sm:$0xf] %v392
    %425 = vst [vmem:[#allocation2 + $0x4] sm:$0xf] %v393
    %426 = vst [vmem:[#allocation2 + $0x8] sm:$0xf] %v394
    %427 = vst [vmem:[#allocation2 + $0xc] sm:$0xf] %v395
    %428 = vst [vmem:[#allocation2 + $0x10] sm:$0xf] %v396
    %429 = vst [vmem:[#allocation2 + $0x14] sm:$0xf] %v397
    %430 = vst [vmem:[#allocation2 + $0x18] sm:$0xf] %v398
    %431 = vst [vmem:[#allocation2 + $0x1c] sm:$0xf] %v399
    %432 = vst [vmem:[#allocation2 + $0x20] sm:$0xf] %v400
    %433 = vst [vmem:[#allocation2 + $0x24] sm:$0xf] %v401
    %434 = vst [vmem:[#allocation2 + $0x28] sm:$0xf] %v402
    %435 = vst [vmem:[#allocation2 + $0x2c] sm:$0xf] %v403
    %436 = vst [vmem:[#allocation2 + $0x30] sm:$0xf] %v404
    %437 = vst [vmem:[#allocation2 + $0x34] sm:$0xf] %v405
    %438 = vst [vmem:[#allocation2 + $0x38] sm:$0xf] %v406
    %439 = vst [vmem:[#allocation2 + $0x3c] sm:$0xf] %v407
    // Predicated region
    $region22: #{tpu_custom_call.1} parent=1 // pred_check
      _
    $region23: #{tpu_custom_call.1} parent=1 // pred_check_branch
      %441 = sbr.rel (0) target = $region25
    $region24: #{tpu_custom_call.1} parent=1 // pred_region
      %s443 = ssub.s32 1024, 1024
      %444 = vsyncadd [#allocation3], %s443
      %s445 = sshll.u32 [#allocation2], 4
      %s446 = int_to_ptr.vmem [resolvable:$true] %s445
      %451 = dma.vmem_to_hbm [thread:$0]  %s446, 1024, %s5, [#allocation3], 64, 64, 4
    $region25: #{tpu_custom_call.1} parent=1 // pred_fallthru
      _
    // Predicated region
    $region26: #{tpu_custom_call.1} parent=1 // pred_check
      _
    $region27: #{tpu_custom_call.1} parent=1 // pred_check_branch
      %453 = sbr.rel (0) target = $region29
    $region28: #{tpu_custom_call.1} parent=1 // pred_region
      _
    $region29: #{tpu_custom_call.1} parent=1 // pred_fallthru
      _
    // Predicated region
    $region30: #{tpu_custom_call.1} parent=1 // pred_check
      _
    $region31: #{tpu_custom_call.1} parent=1 // pred_check_branch
      %455 = sbr.rel (0) target = $region33
    $region32: #{tpu_custom_call.1} parent=1 // pred_region
      %s457 = ssub.s32 16, 16
      %458 = vsyncadd [#allocation5], %s457
      %s460 = sshll.u32 [#allocation4], 4
      %s461 = int_to_ptr.vmem [resolvable:$true] %s460
      %463 = dma.vmem_to_hbm [thread:$0]  %s461, 16, %s7, [#allocation5]
    $region33: #{tpu_custom_call.1} parent=1 // pred_fallthru
      _
    // Predicated region
    $region34: #{tpu_custom_call.1} parent=1 // pred_check
      _
    $region35: #{tpu_custom_call.1} parent=1 // pred_check_branch
      %465 = sbr.rel (0) target = $region37
    $region36: #{tpu_custom_call.1} parent=1 // pred_region
      %466 = dma.done [#allocation3], 1024
    $region37: #{tpu_custom_call.1} parent=1 // pred_fallthru
      _
    // Predicated region
    $region38: #{tpu_custom_call.1} parent=1 // pred_check
      _
    $region39: #{tpu_custom_call.1} parent=1 // pred_check_branch
      %468 = sbr.rel (0) target = $region41
    $region40: #{tpu_custom_call.1} parent=1 // pred_region
      _
    $region41: #{tpu_custom_call.1} parent=1 // pred_fallthru
      _
    // Predicated region
    $region42: #{tpu_custom_call.1} parent=1 // pred_check
      _
    $region43: #{tpu_custom_call.1} parent=1 // pred_check_branch
      %470 = sbr.rel (0) target = $region45
    $region44: #{tpu_custom_call.1} parent=1 // pred_region
      %471 = dma.done [#allocation5], 16
    $region45: #{tpu_custom_call.1} parent=1 // pred_fallthru
      _
    %472 = vsyncpa [#allocation3], 1
    %473 = vsyncpa [#allocation5], 1

</llo_original>
